<compile_context>
chip_gen: v6e
topology: v6e:2x2x1
jax: 0.10.0
libtpu: 0.0.40
codegen_flags: <defaults>
</compile_context>

<pallas_src>
import functools

import jax
import jax.numpy as jnp
import numpy as np
from jax import lax
from jax.experimental import pallas as pl
from jax.experimental.pallas import tpu as pltpu

IGNORE_INDEX = -100
NEG_BIG = -1e30  # finite "-inf" so online-LSE rescaling never produces NaN


def _lse_kernel_single(logits_ref, lse_ref):
    """Whole vocab in one block: lse = max + log(sum(exp(x - max)))."""
    x_nat = logits_ref[...]                               # native dtype tile
    m = jnp.max(x_nat, axis=-1, keepdims=True).astype(jnp.float32)
    x = x_nat.astype(jnp.float32)                         # widen on VMEM only
    lse_ref[...] = m + jnp.log(jnp.sum(jnp.exp(x - m), axis=-1, keepdims=True))


def _lse_kernel_stream(logits_ref, lse_ref, m_sc, l_sc, *, vocab_size,
                       need_col_mask):
    """Grid = (row_blocks, vocab_blocks); online logsumexp over vocab axis.

    logits_ref: (tile_n, tile_v) native-dtype VMEM tile
    lse_ref:    (tile_n, 1) f32 per-row logsumexp (written on last vocab step)
    m_sc/l_sc:  (tile_n, 1) f32 scratch (running max / running sum)
    """
    j = pl.program_id(1)
    nvb = pl.num_programs(1)

    @pl.when(j == 0)
    def _init():
        m_sc[...] = jnp.full_like(m_sc, NEG_BIG)
        l_sc[...] = jnp.zeros_like(l_sc)

    def update(x_nat):
        # running max in native dtype (exact); widen once; exp/acc in f32
        m_prev = m_sc[...]
        m_new = jnp.maximum(
            m_prev, jnp.max(x_nat, axis=-1, keepdims=True).astype(jnp.float32))
        x = x_nat.astype(jnp.float32)
        alpha = jnp.exp(m_prev - m_new)
        l_sc[...] = alpha * l_sc[...] + jnp.sum(jnp.exp(x - m_new), axis=-1,
                                                keepdims=True)
        m_sc[...] = m_new

    if need_col_mask:
        # Hot path: no column mask for every block except the last one.
        @pl.when(j < nvb - 1)
        def _hot():
            update(logits_ref[...])

        @pl.when(j == nvb - 1)
        def _tail():
            x_nat = logits_ref[...]
            tv = x_nat.shape[1]
            col = lax.broadcasted_iota(jnp.int32, (1, tv), 1)  # lane-dense iota
            keep = col < (vocab_size - j * tv)
            update(jnp.where(keep, x_nat, jnp.asarray(NEG_BIG, dtype=x_nat.dtype)))
    else:
        update(logits_ref[...])

    @pl.when(j == nvb - 1)
    def _finalize():
        lse_ref[...] = m_sc[...] + jnp.log(l_sc[...])


def _vmem_capacity_bytes():
    """Physical VMEM per core; conservative 64 MiB (v7x) fallback/floor."""
    cap = 0
    try:
        cap = int(getattr(pltpu.get_tpu_info(), "vmem_capacity_bytes", 0) or 0)
    except Exception:
        cap = 0
    return max(cap, 64 << 20)


def _choose_tiles(n_rows, vocab, itemsize, tile_n, tile_v, vmem_cap):
    """VMEM-budget-driven tiles (temp-aware): ~8 MiB logits blocks on 128 MiB
    chips (v5e/v6e), ~4 MiB on v7x."""
    row_align = {4: 8, 2: 16, 1: 32}.get(itemsize, 8)
    block_budget = (8 << 20) if vmem_cap >= (96 << 20) else (4 << 20)

    if tile_v is None:
        if 128 * vocab * itemsize <= block_budget:
            tile_v = vocab                                   # whole vocab/block
        else:
            tile_v = max((block_budget // (128 * itemsize)) // 128 * 128, 128)
            # Prefer a vocab tile that divides V exactly -> no OOB column mask
            if vocab % 128 == 0 and vocab % tile_v != 0:
                q, best, d = vocab // 128, 1, 1
                while d * d <= q:
                    if q % d == 0:
                        for c in (d, q // d):
                            if c * 128 <= tile_v:
                                best = max(best, c)
                    d += 1
                tile_v = best * 128
    tile_v = int(tile_v)
    if tile_v >= vocab:
        tile_v = vocab
    else:
        assert tile_v % 128 == 0, "vocab tile must be a multiple of 128"

    if tile_n is None:
        tile_n = max(block_budget // (tile_v * itemsize), row_align)
        # Keep >= 2 row blocks so the "parallel" row axis shards across the
        # two TensorCores on v7x (negligible cost on single-TC v5e/v6e).
        if n_rows >= 2 * row_align:
            half = ((n_rows + 1) // 2 + row_align - 1) // row_align * row_align
            tile_n = min(tile_n, half)
    tile_n = int(tile_n)
    tile_n = max((min(tile_n, n_rows) // row_align) * row_align, row_align)
    return tile_n, tile_v, row_align


def chunked_cross_entropy_loss(logits, targets, chunk_size=128,
                               ignore_index=IGNORE_INDEX, *,
                               tile_n=None, tile_v=None):
    """JAX/Pallas equivalent of ChunkedCrossEntropyLoss.forward (tensor path).

    `chunk_size` does not change the math (sum of per-element losses divided
    by the non-ignored count), so kernel tiles are chosen from the VMEM budget
    instead (override with tile_n / tile_v for testing).
    """
    del chunk_size  # math is chunking-invariant; tiling chosen independently
    V = int(logits.shape[-1])
    logits2d = logits.reshape(-1, V)                      # keep native dtype!
    tflat = targets.reshape(-1).astype(jnp.int32)
    N = logits2d.shape[0]
    itemsize = logits2d.dtype.itemsize

    vmem_cap = _vmem_capacity_bytes()
    tn, tv, row_align = _choose_tiles(max(N, 1), V, itemsize, tile_n, tile_v,
                                      vmem_cap)

    # Only pad logits rows if there are fewer rows than one alignment unit
    # (tiny); otherwise the ragged row tail is handled by slicing the output.
    n_rows = N
    if n_rows < row_align:
        logits2d = jnp.pad(logits2d, ((0, row_align - n_rows), (0, 0)))
        n_rows = row_align
    tn = min(tn, n_rows)

    num_rb = pl.cdiv(n_rows, tn)
    num_vb = pl.cdiv(V, tv)
    need_col_mask = (num_vb * tv != V)
    n_out = num_rb * tn

    # NOTE (forward-only): the ragged last row block reads logits rows past N
    # (undefined data).  Rows are independent, so garbage only lands in lse
    # entries >= N which are sliced away below.  Do not reuse in a backward
    # kernel without explicit masking.
    cost = pl.CostEstimate(
        flops=int(4 * n_rows * V),
        transcendentals=int(n_rows * V),
        bytes_accessed=int(n_rows * V * itemsize + n_out * 4))

    # Double-buffered native logits block + f32 temporaries (widened tile,
    # exp tile) + lane-padded per-row buffers + slack, capped below physical
    # VMEM with 16 MiB headroom.
    vmem_need = (2 * tn * tv * itemsize + 3 * tn * tv * 4
                 + 6 * tn * 128 * 4 + (2 << 20))
    vmem_limit = int(min(max(vmem_need, 32 << 20),
                         max(vmem_cap - (16 << 20), 32 << 20)))

    if num_vb == 1:
        kernel = _lse_kernel_single
        grid = (num_rb,)
        in_specs = [pl.BlockSpec((tn, tv), lambda i: (i, 0))]
        out_specs = pl.BlockSpec((tn, 1), lambda i: (i, 0))
        scratch_shapes = ()
        dims = ("parallel",)
    else:
        kernel = functools.partial(_lse_kernel_stream, vocab_size=V,
                                   need_col_mask=need_col_mask)
        grid = (num_rb, num_vb)
        in_specs = [pl.BlockSpec((tn, tv), lambda i, j: (i, j))]
        out_specs = pl.BlockSpec((tn, 1), lambda i, j: (i, 0))
        scratch_shapes = [pltpu.VMEM((tn, 1), jnp.float32)] * 2
        dims = ("parallel", "arbitrary")

    per_row_lse = pl.pallas_call(
        kernel,
        out_shape=jax.ShapeDtypeStruct((n_out, 1), jnp.float32),
        grid_spec=pltpu.PrefetchScalarGridSpec(
            num_scalar_prefetch=0,
            grid=grid,
            in_specs=in_specs,
            out_specs=out_specs,
            scratch_shapes=scratch_shapes),
        compiler_params=pltpu.CompilerParams(
            dimension_semantics=dims, vmem_limit_bytes=vmem_limit),
        cost_estimate=cost,
    )(logits2d)

    lse = per_row_lse[:N, 0]
    # O(N) target-logit gather OUTSIDE the N*V hot loop.
    # NOTE: targets >= V that are not ignore_index are clipped (torch errors).
    picked = jnp.take_along_axis(
        logits2d[:N], jnp.clip(tflat, 0, V - 1)[:, None], axis=-1)
    picked = picked[:, 0].astype(jnp.float32)
    valid = tflat != ignore_index
    row_loss = jnp.where(valid, lse - picked, 0.0)
    count = jnp.sum(valid.astype(jnp.float32))
    # sum(loss_chunks) / max(non_masked_elems, 1)
    return (jnp.sum(row_loss) / jnp.maximum(count, 1.0)).astype(jnp.float32)


def _reference_loss(logits, targets, ignore_index=IGNORE_INDEX):
    """Pure-JAX reference (same math as torch cross_entropy + chunk average)."""
    V = logits.shape[-1]
    x = logits.reshape(-1, V).astype(jnp.float32)
    t = targets.reshape(-1).astype(jnp.int32)
    lse = jax.scipy.special.logsumexp(x, axis=-1)
    picked = jnp.take_along_axis(x, jnp.clip(t, 0, V - 1)[:, None], axis=-1)[:, 0]
    valid = t != ignore_index
    loss = jnp.where(valid, lse - picked, 0.0)
    return loss.sum() / jnp.maximum(valid.sum().astype(jnp.float32), 1.0)


if __name__ == "__main__":
    key = jax.random.PRNGKey(0)
    k1, k2, k3, k4 = jax.random.split(key, 4)

    # Test 1: f32 logits, ragged row count (N = 200), auto tile selection
    # (single vocab block, >= 2 row blocks).
    B, T, V = 2, 100, 128
    logits = jax.random.normal(k1, (B, T, V), dtype=jnp.float32)
    targets = jax.random.randint(k2, (B, T), 0, V, dtype=jnp.int32)
    mask = (jnp.arange(B * T).reshape(B, T) % 7) == 0
    targets = jnp.where(mask, IGNORE_INDEX, targets)

    loss = chunked_cross_entropy_loss(logits, targets)
    jax.block_until_ready(loss)
    ref = _reference_loss(logits, targets)
    np.testing.assert_allclose(np.asarray(loss), np.asarray(ref),
                               rtol=1e-5, atol=1e-5)

    # Test 1b: same inputs, forced small row tile -> 4 row blocks with a
    # ragged (garbage, sliced-away) tail; no logits padding.
    loss_b = chunked_cross_entropy_loss(logits, targets, tile_n=64)
    jax.block_until_ready(loss_b)
    np.testing.assert_allclose(np.asarray(loss_b), np.asarray(ref),
                               rtol=1e-5, atol=1e-5)

    # Test 2: bf16 logits streamed natively, ragged vocab (V = 320) with forced
    # vocab tiling -> online logsumexp across 3 vocab blocks; the OOB column
    # mask runs only on the last vocab step.
    B2, T2, V2 = 2, 64, 320
    logits2 = jax.random.normal(k3, (B2, T2, V2),
                                dtype=jnp.float32).astype(jnp.bfloat16)
    targets2 = jax.random.randint(k4, (B2, T2), 0, V2, dtype=jnp.int32)
    mask2 = (jnp.arange(B2 * T2).reshape(B2, T2) % 5) == 0
    targets2 = jnp.where(mask2, IGNORE_INDEX, targets2)

    loss2 = chunked_cross_entropy_loss(logits2, targets2, tile_n=64, tile_v=128)
    jax.block_until_ready(loss2)
    ref2 = _reference_loss(logits2.astype(jnp.float32), targets2)
    np.testing.assert_allclose(np.asarray(loss2), np.asarray(ref2),
                               rtol=3e-5, atol=3e-5)

    print("KERNEL_OK")
</pallas_src>

<mosaic_0001>
module attributes {stable_mosaic.version = 11 : i64} {
  func.func @_lse_kernel_single(%arg0: i32, %arg1: memref<104x128xf32, #tpu.memory_space<vmem>>, %arg2: memref<104x1xf32, #tpu.memory_space<vmem>>) attributes {dimension_semantics = [#tpu.dimension_semantics<parallel>], iteration_bounds = array<i64: 2>, scalar_prefetch = 0 : i64, scratch_operands = 0 : i64, tpu.core_type = #tpu.core_type<tc>, window_params = [{transform_indices = @transform_0, window_bounds = array<i64: 104, 128>}, {transform_indices = @transform_1, window_bounds = array<i64: 104, 1>}]} {
    %c0 = arith.constant 0 : index
    %c0_0 = arith.constant 0 : index
    %0 = vector.load %arg1[%c0, %c0_0] : memref<104x128xf32, #tpu.memory_space<vmem>>, vector<104x128xf32>
    %cst = arith.constant dense<0xFF800000> : vector<104xf32>
    %1 = vector.multi_reduction <maximumf>, %0, %cst [1] : vector<104x128xf32> to vector<104xf32>
    %2 = vector.shape_cast %1 : vector<104xf32> to vector<104x1xf32>
    %3 = vector.broadcast %2 : vector<104x1xf32> to vector<104x128xf32>
    %4 = arith.subf %0, %3 : vector<104x128xf32>
    %5 = math.exp %4 : vector<104x128xf32>
    %cst_1 = arith.constant dense<0.000000e+00> : vector<104xf32>
    %6 = vector.multi_reduction <add>, %5, %cst_1 [1] : vector<104x128xf32> to vector<104xf32>
    %7 = vector.shape_cast %6 : vector<104xf32> to vector<104x1xf32>
    %8 = math.log %7 : vector<104x1xf32>
    %9 = arith.addf %2, %8 : vector<104x1xf32>
    %c0_2 = arith.constant 0 : index
    %c0_3 = arith.constant 0 : index
    %10 = vector.load %arg2[%c0_2, %c0_3] : memref<104x1xf32, #tpu.memory_space<vmem>>, vector<104x1xf32>
    tpu.vector_store %arg2[%c0_2, %c0_3], %9 {strides = array<i32>} : memref<104x1xf32, #tpu.memory_space<vmem>>, vector<104x1xf32>,
    return
  }
  func.func @transform_0(%arg0: i32) -> (i32, i32) {
    %c0_i32 = arith.constant 0 : i32
    %c0_i32_0 = arith.constant 0 : i32
    return %arg0, %c0_i32 : i32, i32
  }
  func.func @transform_1(%arg0: i32) -> (i32, i32) {
    %c0_i32 = arith.constant 0 : i32
    %c0_i32_0 = arith.constant 0 : i32
    return %arg0, %c0_i32 : i32, i32
  }
}

</mosaic_0001>

<llo_original>
// kernel: tpu_custom_call.1
$region0: #{tpu_custom_call.1}
  #allocation0 [shape = 'u32[]', space=smem, size = 0x4, offset = 0x4, fixed_abs, tag = 'smem constant byte address 0x4 - core index']
  #allocation1 [shape = 'u32[144,128]{1,0:T(1,128)}', space=vmem, size = 0x12000, scoped, tag = 'internal scratch']
  %s0 = inlined_call_operand.hbm [shape: f32[200,128], index: 0, kind: input, shape index: {}]
  %s1 = inlined_call_operand.vmem [shape: f32[208,1], index: 1, kind: output, shape index: {}]
  %s2 = sld [smem:[#allocation0]]
  $region41: #{tpu_custom_call.1} parent=0
    _
  %s4 = ssub.s32 1, %s2
  %s5 = scalar_select 0, %s4, %s2
  $region1: #{tpu_custom_call.1} parent=0
    #allocation2 [shape = 'u8[106496]{0}', space=vmem, size = 0x1a000, scoped, tag = 'input window, operand 0']
    #allocation3 [shape = 's32[2]{0}', space=sflag, size = 0x8, scoped, tag = 'scoped memory for tpu_custom_call.1']
    %6 = vsyncpa [#allocation3], 0
    %s7 = scalar_lea.sflag [#allocation3], 1
    %8 = vsyncpa %s7, 0
    loop: start=0, step=1, limit=4
    $region2: #{tpu_custom_call.1} parent=1 // loop_pre_header
      _
    $region3: #{tpu_custom_call.1} parent=1 // loop_header
      %s10 = sphi 0, %s14
      %p11 = scmp.ge.s32.totalorder %s10, 4
      %s20 = sphi 0, %s22
      %s23 = sphi 0, %s20
      %s24 = sphi 0, %s23
      %s40 = sphi 0, %s24
      %s46 = sphi 0, %s48
      %s49 = sphi 0, %s46
      %s50 = sphi 0, %s49
      %s66 = sphi 0, %s50
    $region4: #{tpu_custom_call.1} parent=1 // loop_header_branch
      %13 = sbr.rel (%p11) target = $region8
    $region5: #{tpu_custom_call.1} parent=1 // loop_body
      %s15 = ssub.s32 %s10, 1
      %s16 = ssub.s32 %s10, 2
      %s17 = sadd.s32 %s10, 1
      %s18 = ssub.s32 %s10, %s17
      %p19 = scmp.eq.s32.totalorder %s18, 0
      %s21 = sadd.s32 %s20, 1
      %s22 = scalar_select %p19, %s20, %s21
      %p25 = pneg %p19
      %p26 = scmp.eq.s32.totalorder %s10, 1
      %p27 = por %p25, %p26
      %p28 = scmp.ne.s32.totalorder %s20, %s23
      %p29 = scmp.eq.s32.totalorder %s10, 0
      %p30 = por %p28, %p29
      %p31 = scmp.ne.s32.totalorder %s20, %s23
      %p32 = scmp.eq.s32.totalorder %s15, 1
      %p33 = por %p31, %p32
      %p34 = scmp.ne.s32.totalorder %s23, %s24
      %p35 = scmp.eq.s32.totalorder %s15, 0
      %p36 = por %p34, %p35
      %p37 = scmp.ne.s32.totalorder %s23, %s24
      %p38 = scmp.eq.s32.totalorder %s16, 1
      %p39 = por %p37, %p38
      %p41 = scmp.ne.s32.totalorder %s24, %s40
      %p42 = scmp.eq.s32.totalorder %s16, 0
      %p43 = por %p41, %p42
      %s44 = ssub.s32 %s10, %s17
      %p45 = scmp.eq.s32.totalorder %s44, 0
      %s47 = sadd.s32 %s46, 1
      %s48 = scalar_select %p45, %s46, %s47
      %p51 = pneg %p45
      %p52 = scmp.eq.s32.totalorder %s10, 1
      %p53 = por %p51, %p52
      %p54 = scmp.ne.s32.totalorder %s46, %s49
      %p55 = scmp.eq.s32.totalorder %s10, 0
      %p56 = por %p54, %p55
      %p57 = scmp.ne.s32.totalorder %s46, %s49
      %p58 = scmp.eq.s32.totalorder %s15, 1
      %p59 = por %p57, %p58
      %p60 = scmp.ne.s32.totalorder %s49, %s50
      %p61 = scmp.eq.s32.totalorder %s15, 0
      %p62 = por %p60, %p61
      %p63 = scmp.ne.s32.totalorder %s49, %s50
      %p64 = scmp.eq.s32.totalorder %s16, 1
      %p65 = por %p63, %p64
      %p67 = scmp.ne.s32.totalorder %s50, %s66
      %p68 = scmp.eq.s32.totalorder %s16, 0
      %p69 = por %p67, %p68
      %p70 = scmp.le.s32.totalorder 1, %s10
      %p71 = scmp.lt.s32.totalorder %s10, 3
      %p72 = pnand %p70, %p71
      %p73 = pneg %p72
      // Predicated region
      $region9: #{tpu_custom_call.1} parent=5 // pred_check
        _
      $region10: #{tpu_custom_call.1} parent=5 // pred_check_branch
        %75 = sbr.rel (%p72) target = $region12
      $region11: #{tpu_custom_call.1} parent=5 // pred_region
        %s76 = ssub.s32 %s10, 1
      $region12: #{tpu_custom_call.1} parent=5 // pred_fallthru
        _
      %p77 = scmp.lt.s32.totalorder %s10, 2
      // Predicated region
      $region13: #{tpu_custom_call.1} parent=5 // pred_check
        %p78 = pneg %p77
      $region14: #{tpu_custom_call.1} parent=5 // pred_check_branch
        %80 = sbr.rel (%p78) target = $region16
      $region15: #{tpu_custom_call.1} parent=5 // pred_region
        // Predicated region
        $region17: #{tpu_custom_call.1} parent=15 // pred_check
          %p81 = pneg %p30
        $region18: #{tpu_custom_call.1} parent=15 // pred_check_branch
          %83 = sbr.rel (%p81) target = $region20
        $region19: #{tpu_custom_call.1} parent=15 // pred_region
          %s84 = sand.u32 %s20, 1
          %s85 = scalar_lea.sflag [#allocation3], %s84
          %s86 = sand.u32 %s20, 1
          %s87 = smul.addr %s86, 104
          %s88 = scalar_lea.vmem [#allocation2], %s87
          %s89 = smul.u32 13, %s10
          %s90 = ssub.s32 25, %s89
          %p91 = scmp.lt.s32.totalorder %s90, 13
          %s92 = scalar_select %p91, %s90, 13
          %s93 = smul.u32 128, %s92
          %s95 = ssub.s32 1664, %s93
          %96 = vsyncadd %s85, %s95
          %p97 = scmp.ne.s32.totalorder 0, %s93
          %s98 = smul.addr %s89, 128
          %s99 = scalar_lea.hbm %s0, %s98
          %s100 = smul.u32 8, %s92
          %s101 = sshll.u32 %s88, 4
          %s102 = int_to_ptr.vmem [resolvable:$true] %s101
          %s103 = sshll.u32 %s100, 4
          %107 = dma.hbm_to_vmem [thread:$0]  (%p97), %s99, %s103, %s102, %s85, 128, 128, 8
        $region20: #{tpu_custom_call.1} parent=15 // pred_fallthru
          _
      $region16: #{tpu_custom_call.1} parent=5 // pred_fallthru
        _
      %p108 = scmp.le.s32.totalorder 1, %s10
      %p109 = scmp.lt.s32.totalorder %s10, 3
      %p110 = pnand %p108, %p109
      %p111 = pneg %p110
      // Predicated region
      $region21: #{tpu_custom_call.1} parent=5 // pred_check
        _
      $region22: #{tpu_custom_call.1} parent=5 // pred_check_branch
        %113 = sbr.rel (%p110) target = $region24
      $region23: #{tpu_custom_call.1} parent=5 // pred_region
        %s114 = ssub.s32 %s10, 1
        %s115 = sand.u32 %s23, 1
        %s116 = scalar_lea.sflag [#allocation3], %s115
        %s117 = sand.u32 %s23, 1
        %s118 = smul.addr %s117, 104
        %s119 = scalar_lea.vmem [#allocation2], %s118
        // Predicated region
        $region25: #{tpu_custom_call.1} parent=23 // pred_check
          %p120 = pneg %p36
        $region26: #{tpu_custom_call.1} parent=23 // pred_check_branch
          %122 = sbr.rel (%p120) target = $region28
        $region27: #{tpu_custom_call.1} parent=23 // pred_region
          %123 = dma.done %s116, 1664
        $region28: #{tpu_custom_call.1} parent=23 // pred_fallthru
          _
        %s124 = sand.u32 %s23, 1
        %s125 = scalar_lea.sflag [#allocation3], %s124
        %s126 = sand.u32 %s23, 1
        %s127 = smul.addr %s126, 104
        %s128 = scalar_lea.vmem [#allocation2], %s127
        %p129 = pneg %p36
        %p130 = pneg %p33
        %p131 = pneg %p62
        %p132 = pneg %p59
        %s133 = smul.u32 13, %s15
        %p134 = scmp.lt.s32.totalorder %s133, 25
        %s135 = scalar_select %p134, %s133, 25
        %s136 = smul.addr %s135, 8
        %s137 = scalar_lea.vmem %s1, %s136
        %s138 = smul.u32 13, %s15
        %s139 = ssub.s32 25, %s138
        %p140 = scmp.lt.s32.totalorder %s139, 13
        %s141 = scalar_select %p140, %s139, 13
        %s142 = smul.u32 128, %s141
        %s143 = smul.u32 13, %s15
        %p144 = scmp.lt.s32.totalorder %s143, 25
        %s145 = scalar_select %p144, %s143, 25
        %s146 = smul.addr %s145, 8
        %s147 = scalar_lea.vmem %s1, %s146
        %s148 = smul.u32 13, %s15
        %v149 = vld [vmem:[%s119] sm:$0xff]
        %v150 = vld [vmem:[%s119 + $0x8] sm:$0xff]
        %v151 = vld [vmem:[%s119 + $0x10] sm:$0xff]
        %v152 = vld [vmem:[%s119 + $0x18] sm:$0xff]
        %v153 = vld [vmem:[%s119 + $0x20] sm:$0xff]
        %v154 = vld [vmem:[%s119 + $0x28] sm:$0xff]
        %v155 = vld [vmem:[%s119 + $0x30] sm:$0xff]
        %v156 = vld [vmem:[%s119 + $0x38] sm:$0xff]
        %v157 = vld [vmem:[%s119 + $0x40] sm:$0xff]
        %v158 = vld [vmem:[%s119 + $0x48] sm:$0xff]
        %v159 = vld [vmem:[%s119 + $0x50] sm:$0xff]
        %v160 = vld [vmem:[%s119 + $0x58] sm:$0xff]
        %v161 = vld [vmem:[%s119 + $0x60] sm:$0xff]
        %162 = vmax.xlane.f32.xlu0 %v149
        %v163 = vpop.xlane.xlu0 %162
        %164 = vmax.xlane.f32.xlu0 %v150
        %v165 = vpop.xlane.xlu0 %164
        %166 = vmax.xlane.f32.xlu0 %v151
        %v167 = vpop.xlane.xlu0 %166
        %168 = vmax.xlane.f32.xlu0 %v152
        %v169 = vpop.xlane.xlu0 %168
        %170 = vmax.xlane.f32.xlu0 %v153
        %v171 = vpop.xlane.xlu0 %170
        %172 = vmax.xlane.f32.xlu0 %v154
        %v173 = vpop.xlane.xlu0 %172
        %174 = vmax.xlane.f32.xlu0 %v155
        %v175 = vpop.xlane.xlu0 %174
        %176 = vmax.xlane.f32.xlu0 %v156
        %v177 = vpop.xlane.xlu0 %176
        %178 = vmax.xlane.f32.xlu0 %v157
        %v179 = vpop.xlane.xlu0 %178
        %180 = vmax.xlane.f32.xlu0 %v158
        %v181 = vpop.xlane.xlu0 %180
        %182 = vmax.xlane.f32.xlu0 %v159
        %v183 = vpop.xlane.xlu0 %182
        %184 = vmax.xlane.f32.xlu0 %v160
        %v185 = vpop.xlane.xlu0 %184
        %186 = vmax.xlane.f32.xlu0 %v161
        %v187 = vpop.xlane.xlu0 %186
        %v188 = vsub.f32 %v149, %v163
        %v189 = vsub.f32 %v150, %v165
        %v190 = vsub.f32 %v151, %v167
        %v191 = vsub.f32 %v152, %v169
        %v192 = vsub.f32 %v153, %v171
        %v193 = vsub.f32 %v154, %v173
        %v194 = vsub.f32 %v155, %v175
        %v195 = vsub.f32 %v156, %v177
        %v196 = vsub.f32 %v157, %v179
        %v197 = vsub.f32 %v158, %v181
        %v198 = vsub.f32 %v159, %v183
        %v199 = vsub.f32 %v160, %v185
        %v200 = vsub.f32 %v161, %v187
        %v201 = vmul.f32 %v188, 1.442695
        %v202 = vpow.pop %v201
        %v203 = vmul.f32 %v189, 1.442695
        %v204 = vpow.pop %v203
        %v205 = vmul.f32 %v190, 1.442695
        %v206 = vpow.pop %v205
        %v207 = vmul.f32 %v191, 1.442695
        %v208 = vpow.pop %v207
        %v209 = vmul.f32 %v192, 1.442695
        %v210 = vpow.pop %v209
        %v211 = vmul.f32 %v193, 1.442695
        %v212 = vpow.pop %v211
        %v213 = vmul.f32 %v194, 1.442695
        %v214 = vpow.pop %v213
        %v215 = vmul.f32 %v195, 1.442695
        %v216 = vpow.pop %v215
        %v217 = vmul.f32 %v196, 1.442695
        %v218 = vpow.pop %v217
        %v219 = vmul.f32 %v197, 1.442695
        %v220 = vpow.pop %v219
        %v221 = vmul.f32 %v198, 1.442695
        %v222 = vpow.pop %v221
        %v223 = vmul.f32 %v199, 1.442695
        %v224 = vpow.pop %v223
        %v225 = vmul.f32 %v200, 1.442695
        %v226 = vpow.pop %v225
        %227 = vadd.xlane.f32.xlu0 %v202
        %v228 = vpop.xlane.xlu0 %227
        %229 = vadd.xlane.f32.xlu0 %v204
        %v230 = vpop.xlane.xlu0 %229
        %231 = vadd.xlane.f32.xlu0 %v206
        %v232 = vpop.xlane.xlu0 %231
        %233 = vadd.xlane.f32.xlu0 %v208
        %v234 = vpop.xlane.xlu0 %233
        %235 = vadd.xlane.f32.xlu0 %v210
        %v236 = vpop.xlane.xlu0 %235
        %237 = vadd.xlane.f32.xlu0 %v212
        %v238 = vpop.xlane.xlu0 %237
        %239 = vadd.xlane.f32.xlu0 %v214
        %v240 = vpop.xlane.xlu0 %239
        %241 = vadd.xlane.f32.xlu0 %v216
        %v242 = vpop.xlane.xlu0 %241
        %243 = vadd.xlane.f32.xlu0 %v218
        %v244 = vpop.xlane.xlu0 %243
        %245 = vadd.xlane.f32.xlu0 %v220
        %v246 = vpop.xlane.xlu0 %245
        %247 = vadd.xlane.f32.xlu0 %v222
        %v248 = vpop.xlane.xlu0 %247
        %249 = vadd.xlane.f32.xlu0 %v224
        %v250 = vpop.xlane.xlu0 %249
        %251 = vadd.xlane.f32.xlu0 %v226
        %v252 = vpop.xlane.xlu0 %251
        %v253 = vlog2.pop %v228
        %v254 = vmul.f32 %v253, 0.6931472
        %v255 = vlog2.pop %v230
        %v256 = vmul.f32 %v255, 0.6931472
        %v257 = vlog2.pop %v232
        %v258 = vmul.f32 %v257, 0.6931472
        %v259 = vlog2.pop %v234
        %v260 = vmul.f32 %v259, 0.6931472
        %v261 = vlog2.pop %v236
        %v262 = vmul.f32 %v261, 0.6931472
        %v263 = vlog2.pop %v238
        %v264 = vmul.f32 %v263, 0.6931472
        %v265 = vlog2.pop %v240
        %v266 = vmul.f32 %v265, 0.6931472
        %v267 = vlog2.pop %v242
        %v268 = vmul.f32 %v267, 0.6931472
        %v269 = vlog2.pop %v244
        %v270 = vmul.f32 %v269, 0.6931472
        %v271 = vlog2.pop %v246
        %v272 = vmul.f32 %v271, 0.6931472
        %v273 = vlog2.pop %v248
        %v274 = vmul.f32 %v273, 0.6931472
        %v275 = vlog2.pop %v250
        %v276 = vmul.f32 %v275, 0.6931472
        %v277 = vlog2.pop %v252
        %v278 = vmul.f32 %v277, 0.6931472
        %v279 = vadd.f32 %v163, %v254
        %v280 = vadd.f32 %v165, %v256
        %v281 = vadd.f32 %v167, %v258
        %v282 = vadd.f32 %v169, %v260
        %v283 = vadd.f32 %v171, %v262
        %v284 = vadd.f32 %v173, %v264
        %v285 = vadd.f32 %v175, %v266
        %v286 = vadd.f32 %v177, %v268
        %v287 = vadd.f32 %v179, %v270
        %v288 = vadd.f32 %v181, %v272
        %v289 = vadd.f32 %v183, %v274
        %v290 = vadd.f32 %v185, %v276
        %v291 = vadd.f32 %v187, %v278
        %vm292 = vcmask 7168
        %293 = vst.msk [vmem:[%s147] sm:$0xff] %vm292, %v279
        %294 = vst.msk [vmem:[%s147 + $0x8] sm:$0xff] %vm292, %v280
        %295 = vst.msk [vmem:[%s147 + $0x10] sm:$0xff] %vm292, %v281
        %296 = vst.msk [vmem:[%s147 + $0x18] sm:$0xff] %vm292, %v282
        %297 = vst.msk [vmem:[%s147 + $0x20] sm:$0xff] %vm292, %v283
        %298 = vst.msk [vmem:[%s147 + $0x28] sm:$0xff] %vm292, %v284
        %299 = vst.msk [vmem:[%s147 + $0x30] sm:$0xff] %vm292, %v285
        %300 = vst.msk [vmem:[%s147 + $0x38] sm:$0xff] %vm292, %v286
        %301 = vst.msk [vmem:[%s147 + $0x40] sm:$0xff] %vm292, %v287
        %302 = vst.msk [vmem:[%s147 + $0x48] sm:$0xff] %vm292, %v288
        %303 = vst.msk [vmem:[%s147 + $0x50] sm:$0xff] %vm292, %v289
        %304 = vst.msk [vmem:[%s147 + $0x58] sm:$0xff] %vm292, %v290
        %305 = vst.msk [vmem:[%s147 + $0x60] sm:$0xff] %vm292, %v291
        %s306 = smul.u32 13, %s15
        %p307 = scmp.lt.s32.totalorder %s306, 25
        %s308 = scalar_select %p307, %s306, 25
        %s309 = smul.addr %s308, 8
        %s310 = scalar_lea.vmem %s1, %s309
        // Predicated region
        $region29: #{tpu_custom_call.1} parent=23 // pred_check
          %p311 = pneg %p59
        $region30: #{tpu_custom_call.1} parent=23 // pred_check_branch
          %313 = sbr.rel (%p311) target = $region32
        $region31: #{tpu_custom_call.1} parent=23 // pred_region
          %s314 = smul.u32 13, %s15
        $region32: #{tpu_custom_call.1} parent=23 // pred_fallthru
          _
      $region24: #{tpu_custom_call.1} parent=5 // pred_fallthru
        _
      %p315 = scmp.le.s32.totalorder 2, %s10
      // Predicated region
      $region33: #{tpu_custom_call.1} parent=5 // pred_check
        %p316 = pneg %p315
      $region34: #{tpu_custom_call.1} parent=5 // pred_check_branch
        %318 = sbr.rel (%p316) target = $region36
      $region35: #{tpu_custom_call.1} parent=5 // pred_region
        %s319 = ssub.s32 %s10, 2
        // Predicated region
        $region37: #{tpu_custom_call.1} parent=35 // pred_check
          %p320 = pneg %p65
        $region38: #{tpu_custom_call.1} parent=35 // pred_check_branch
          %322 = sbr.rel (%p320) target = $region40
        $region39: #{tpu_custom_call.1} parent=35 // pred_region
          %s323 = smul.u32 13, %s16
          %p324 = scmp.lt.s32.totalorder %s323, 25
          %s325 = scalar_select %p324, %s323, 25
          %s326 = smul.addr %s325, 8
          %s327 = scalar_lea.vmem %s1, %s326
        $region40: #{tpu_custom_call.1} parent=35 // pred_fallthru
          _
      $region36: #{tpu_custom_call.1} parent=5 // pred_fallthru
        _
    $region6: #{tpu_custom_call.1} parent=1 // loop_footer
      %s14 = sadd.s32 1, %s10
    $region7: #{tpu_custom_call.1} parent=1 // loop_footer_branch
      %9 = sbr.rel target = $region3
    $region8: #{tpu_custom_call.1} parent=1 // loop_exit
      _
    %328 = vsyncpa [#allocation3], 1
    %s329 = scalar_lea.sflag [#allocation3], 1
    %330 = vsyncpa %s329, 1

</llo_original>
